<compile_context>
chip_gen: v7x
topology: tpu7x:2x2x1
jax: 0.10.0
libtpu: 0.0.40
codegen_flags: <defaults>
</compile_context>

<pallas_src>
import functools

import jax
import jax.numpy as jnp
from jax.experimental import pallas as pl
from jax.experimental.pallas import tpu as pltpu


def _round_up(x, m):
    return (x + m - 1) // m * m


def _embed_kernel(idx_ref, table_ref, out_ref):
    # idx_ref:   (BR, P)      int32  raw (unshifted) indices
    # table_ref: (P*Vp, P*D)  f32    block-diagonal zero-padded table (resident)
    # out_ref:   (BR, P*D)    f32    lane-dense packed output slab
    idx = idx_ref[...]
    br, p = idx.shape
    vp = table_ref.shape[0] // p          # padded vocab rows per diagonal block

    # Block-sliced one-hot: every pack slot compares its raw index column
    # against the same local [0, Vp) iota; slices are 128-lane aligned
    # (Vp % 128 == 0 whenever p > 1) so the concatenate is the aligned case.
    col = jax.lax.broadcasted_iota(jnp.int32, (br, vp), 1)
    pieces = [(idx[:, k:k + 1] == col).astype(table_ref.dtype) for k in range(p)]
    oh = pieces[0] if p == 1 else jnp.concatenate(pieces, axis=1)   # (BR, P*Vp)

    # Single (BR, P*Vp) @ (P*Vp, P*D) MXU matmul writes the lane-dense slab.
    # Exact gather: the one-hot operand is strictly {0, 1}.
    out_ref[...] = jnp.dot(
        oh, table_ref[...], preferred_element_type=jnp.float32
    ).astype(out_ref.dtype)


def _pack_factor(embedding_dim):
    assert embedding_dim % 128 == 0 or 128 % embedding_dim == 0, (
        "embedding_dim must divide or be a multiple of 128")
    return 1 if embedding_dim % 128 == 0 else 128 // embedding_dim


def prepare_block_table(embedding_table):
    """One-time prep (call at init, NOT per forward): zero-pad the vocab to a
    lane-aligned size and build the block-diagonal (P*Vp, P*D) table."""
    v, d = embedding_table.shape
    p = _pack_factor(d)
    if p == 1:
        return embedding_table
    vp = _round_up(v, 128)
    padded = jnp.zeros((vp, d), embedding_table.dtype).at[:v, :].set(embedding_table)
    # Block k holds the padded table at rows [k*Vp,(k+1)*Vp), cols [k*D,(k+1)*D).
    return jnp.kron(jnp.eye(p, dtype=embedding_table.dtype), padded)


def _choose_tile(nr_raw, block_rows):
    """Slab-row tile: multiple of 8 sublanes, ~<= block_rows, and >= 2 grid
    steps when enough rows exist (so both v7x TensorCores get work)."""
    num_steps = max(1, pl.cdiv(nr_raw, block_rows))
    if nr_raw >= 16:
        num_steps = max(num_steps, 2)
    return max(8, _round_up(pl.cdiv(nr_raw, num_steps), 8))


@functools.partial(jax.jit, static_argnames=("embedding_dim", "block_rows"))
def _element_encoder_fwd(element, block_table, *, embedding_dim, block_rows):
    d = embedding_dim
    pvp, pd = block_table.shape
    p = pd // d

    orig_shape = element.shape
    flat = element.reshape(-1).astype(jnp.int32)        # torch .long() equivalent
    n = flat.shape[0]

    nr_raw = pl.cdiv(n, p)                              # slab rows needed
    br = _choose_tile(nr_raw, block_rows)
    nr = _round_up(nr_raw, br)
    n_pad = nr * p

    # Pad with index 0 (the padding row -> zeros); sliced off below.
    flat = jnp.pad(flat, (0, n_pad - n))
    idx = flat.reshape(nr, p)                           # raw indices, no shift

    out = pl.pallas_call(
        _embed_kernel,
        out_shape=jax.ShapeDtypeStruct((nr, pd), block_table.dtype),
        grid_spec=pltpu.PrefetchScalarGridSpec(
            num_scalar_prefetch=0,
            grid=(nr // br,),
            in_specs=[
                pl.BlockSpec((br, p), lambda i: (i, 0)),   # indices: new tile per step
                # Resident table (constant index_map -> stays in VMEM across
                # steps).  Only ~256 KiB here; for much larger V request
                # pipeline_mode=pl.Buffered(1) on this spec or take the
                # gather fallback below instead.
                pl.BlockSpec((pvp, pd), lambda i: (0, 0)),
            ],
            out_specs=pl.BlockSpec((br, pd), lambda i: (i, 0)),
        ),
        compiler_params=pltpu.CompilerParams(
            dimension_semantics=("parallel",),             # megacore split on v7x
            vmem_limit_bytes=32 * 1024 * 1024,             # safe under v7x's 64 MiB/TC
        ),
    )(idx, block_table)

    # (nr, P*D) is the same contiguous buffer as (n_pad, D): reshape is free.
    out = out.reshape(n_pad, d)[:n]
    return out.reshape(orig_shape + (d,))


# Beyond this the resident block-diagonal table + (BR, P*Vp) one-hot lose to a
# plain row gather (FLOPs ~ N*P*V*D and VMEM blowup).
_MAX_BLOCK_TABLE_BYTES = 8 * 1024 * 1024


class ElementEncoder:
    """Pallas TPU equivalent of the PyTorch ElementEncoder forward.

    Requires the embedding table's row 0 to be zero for padding_idx=0
    semantics (as nn.Embedding / init_embedding guarantee).
    """

    def __init__(self, embedding_table, *, block_rows=2048):
        v, d = embedding_table.shape
        self.num_elements = v
        self.embedding_dim = d
        self.block_rows = block_rows
        p = _pack_factor(d)
        vp = v if p == 1 else _round_up(v, 128)
        block_bytes = (p * vp) * (p * d) * embedding_table.dtype.itemsize
        self._use_pallas = block_bytes <= _MAX_BLOCK_TABLE_BYTES
        if self._use_pallas:
            # Hoisted out of the per-call path (perf review): built exactly once.
            self.block_table = prepare_block_table(embedding_table)
        else:
            # TODO(synk): large-vocab path should be a scalar-prefetch / manual
            # DMA row-gather Pallas kernel; fall back to the XLA gather for now.
            self.table = embedding_table

    def __call__(self, element):
        if self._use_pallas:
            return _element_encoder_fwd(
                element, self.block_table,
                embedding_dim=self.embedding_dim, block_rows=self.block_rows)
        return jnp.take(self.table, element.astype(jnp.int32), axis=0)


def init_embedding(key, num_elements, embedding_dim):
    # nn.Embedding default init: N(0, 1); padding_idx=0 row is zeroed.
    table = jax.random.normal(key, (num_elements, embedding_dim), dtype=jnp.float32)
    return table.at[0].set(0.0)


if __name__ == "__main__":
    key = jax.random.PRNGKey(0)
    k_tab, k_idx, k_idx2 = jax.random.split(key, 3)

    num_elements = 64      # vocabulary size
    embedding_dim = 32     # hidden dim
    batch, seq = 2, 8      # element shape (B, S)

    table = init_embedding(k_tab, num_elements, embedding_dim)
    encoder = ElementEncoder(table)

    element = jax.random.randint(k_idx, (batch, seq), 0, num_elements, dtype=jnp.int32)
    # make sure the padding index (0) appears, like real padded sequences
    element = element.at[0, -1].set(0)
    element = element.at[1, -2].set(0)

    out = jax.block_until_ready(encoder(element))
    ref = jnp.take(table, element, axis=0)
    assert out.shape == (batch, seq, embedding_dim)
    assert jnp.allclose(out, ref, atol=1e-6), "mismatch vs reference gather (small)"
    assert jnp.all(out[0, -1] == 0.0) and jnp.all(out[1, -2] == 0.0)

    # larger shape exercising the tiled multi-step (parallel, >=2 steps) grid path
    big_elem = jax.random.randint(k_idx2, (8, 512), 0, num_elements, dtype=jnp.int32)
    big_out = jax.block_until_ready(encoder(big_elem))
    big_ref = jnp.take(table, big_elem, axis=0)
    assert big_out.shape == (8, 512, embedding_dim)
    assert jnp.allclose(big_out, big_ref, atol=1e-6), "mismatch vs reference gather (tiled)"

    print("KERNEL_OK")
</pallas_src>

<mosaic_0001>
module attributes {stable_mosaic.version = 11 : i64} {
  func.func @_embed_kernel(%arg0: i32, %arg1: memref<8x4xi32, #tpu.memory_space<vmem>>, %arg2: memref<512x128xf32, #tpu.memory_space<vmem>>, %arg3: memref<8x128xf32, #tpu.memory_space<vmem>>) attributes {dimension_semantics = [#tpu.dimension_semantics<parallel>], iteration_bounds = array<i64: 1>, scalar_prefetch = 0 : i64, scratch_operands = 0 : i64, tpu.core_type = #tpu.core_type<tc>, window_params = [{transform_indices = @transform_0, window_bounds = array<i64: 8, 4>}, {pipeline_mode = #tpu.pipeline_mode<synchronous>, transform_indices = @transform_1, window_bounds = array<i64: 512, 128>}, {transform_indices = @transform_2, window_bounds = array<i64: 8, 128>}]} {
    %c0 = arith.constant 0 : index
    %c0_0 = arith.constant 0 : index
    %0 = vector.load %arg1[%c0, %c0_0] : memref<8x4xi32, #tpu.memory_space<vmem>>, vector<8x4xi32>
    %1 = tpu.iota {dimensions = array<i32: 1>} : vector<8x128xi32>
    %2 = vector.extract_strided_slice %0 {offsets = [0, 0], sizes = [8, 1], strides = [1, 1]} : vector<8x4xi32> to vector<8x1xi32>
    %3 = vector.broadcast %2 : vector<8x1xi32> to vector<8x128xi32>
    %4 = arith.cmpi eq, %3, %1 : vector<8x128xi32>
    %5 = arith.extui %4 : vector<8x128xi1> to vector<8x128xi32>
    %6 = arith.sitofp %5 : vector<8x128xi32> to vector<8x128xf32>
    %7 = vector.extract_strided_slice %0 {offsets = [0, 1], sizes = [8, 1], strides = [1, 1]} : vector<8x4xi32> to vector<8x1xi32>
    %8 = vector.broadcast %7 : vector<8x1xi32> to vector<8x128xi32>
    %9 = arith.cmpi eq, %8, %1 : vector<8x128xi32>
    %10 = arith.extui %9 : vector<8x128xi1> to vector<8x128xi32>
    %11 = arith.sitofp %10 : vector<8x128xi32> to vector<8x128xf32>
    %12 = vector.extract_strided_slice %0 {offsets = [0, 2], sizes = [8, 1], strides = [1, 1]} : vector<8x4xi32> to vector<8x1xi32>
    %13 = vector.broadcast %12 : vector<8x1xi32> to vector<8x128xi32>
    %14 = arith.cmpi eq, %13, %1 : vector<8x128xi32>
    %15 = arith.extui %14 : vector<8x128xi1> to vector<8x128xi32>
    %16 = arith.sitofp %15 : vector<8x128xi32> to vector<8x128xf32>
    %17 = vector.extract_strided_slice %0 {offsets = [0, 3], sizes = [8, 1], strides = [1, 1]} : vector<8x4xi32> to vector<8x1xi32>
    %18 = vector.broadcast %17 : vector<8x1xi32> to vector<8x128xi32>
    %19 = arith.cmpi eq, %18, %1 : vector<8x128xi32>
    %20 = arith.extui %19 : vector<8x128xi1> to vector<8x128xi32>
    %21 = arith.sitofp %20 : vector<8x128xi32> to vector<8x128xf32>
    %22 = tpu.concatenate %6, %11, %16, %21 in 1 : vector<8x128xf32>, vector<8x128xf32>, vector<8x128xf32>, vector<8x128xf32> -> vector<8x512xf32>
    %c0_1 = arith.constant 0 : index
    %c0_2 = arith.constant 0 : index
    %23 = vector.load %arg2[%c0_1, %c0_2] : memref<512x128xf32, #tpu.memory_space<vmem>>, vector<512x128xf32>
    %cst = arith.constant dense<0.000000e+00> : vector<8x128xf32>
    %24 = tpu.matmul %22, %23, %cst {dimension_numbers = #tpu.dot_dimension_numbers<[1], [0], [0], [1], [0, 0, 1, 1], [], []>} : vector<8x512xf32>, vector<512x128xf32>, vector<8x128xf32> -> vector<8x128xf32>
    %c0_3 = arith.constant 0 : index
    %c0_4 = arith.constant 0 : index
    %25 = vector.load %arg3[%c0_3, %c0_4] : memref<8x128xf32, #tpu.memory_space<vmem>>, vector<8x128xf32>
    tpu.vector_store %arg3[%c0_3, %c0_4], %24 {strides = array<i32>} : memref<8x128xf32, #tpu.memory_space<vmem>>, vector<8x128xf32>,
    return
  }
  func.func @transform_0(%arg0: i32) -> (i32, i32) {
    %c0_i32 = arith.constant 0 : i32
    %c0_i32_0 = arith.constant 0 : i32
    return %arg0, %c0_i32 : i32, i32
  }
  func.func @transform_1(%arg0: i32) -> (i32, i32) {
    %c0_i32 = arith.constant 0 : i32
    %c0_i32_0 = arith.constant 0 : i32
    %c0_i32_1 = arith.constant 0 : i32
    return %c0_i32, %c0_i32_0 : i32, i32
  }
  func.func @transform_2(%arg0: i32) -> (i32, i32) {
    %c0_i32 = arith.constant 0 : i32
    %c0_i32_0 = arith.constant 0 : i32
    return %arg0, %c0_i32 : i32, i32
  }
}

</mosaic_0001>

<llo_original>
// kernel: _element_encoder_fwd.1
$region0: #{_element_encoder_fwd.1}
  #allocation0 [shape = 'u32[]', space=smem, size = 0x4, offset = 0x4, fixed_abs, tag = 'smem constant byte address 0x4 - core index']
  #allocation1 [shape = 'u32[144,128]{1,0:T(1,128)}', space=vmem, size = 0x12000, scoped, tag = 'internal scratch']
  %s0 = inlined_call_operand.vmem [shape: s32[8,4], index: 0, kind: input, shape index: {}]
  %s1 = inlined_call_operand.hbm [shape: f32[512,128], index: 1, kind: input, shape index: {}]
  %s2 = inlined_call_operand.vmem [shape: f32[8,128], index: 2, kind: output, shape index: {}]
  %s3 = sld [smem:[#allocation0]]
  $region22: #{_element_encoder_fwd.1} parent=0
    _
  %s5 = ssub.s32 1, %s3
  %s6 = scalar_select 0, %s5, %s3
  $region1: #{_element_encoder_fwd.1} parent=0
    #allocation2 [shape = 'u8[262144]{0}', space=vmem, size = 0x40000, scoped, tag = 'input window, operand 1, single buffered']
    #allocation3 [shape = 's32[1]{0}', space=sflag, size = 0x4, scoped, tag = 'scoped memory for _element_encoder_fwd.1']
    %7 = vsyncpa [#allocation3], 0
    // Predicated region
    $region2: #{_element_encoder_fwd.1} parent=1 // pred_check
      _
    $region3: #{_element_encoder_fwd.1} parent=1 // pred_check_branch
      %9 = sbr.rel (0) target = $region5
    $region4: #{_element_encoder_fwd.1} parent=1 // pred_region
      _
    $region5: #{_element_encoder_fwd.1} parent=1 // pred_fallthru
      _
    // Predicated region
    $region6: #{_element_encoder_fwd.1} parent=1 // pred_check
      _
    $region7: #{_element_encoder_fwd.1} parent=1 // pred_check_branch
      %11 = sbr.rel (0) target = $region9
    $region8: #{_element_encoder_fwd.1} parent=1 // pred_region
      %s13 = ssub.s32 8192, 8192
      %14 = vsyncadd [#allocation3], %s13
      %s15 = sshll.u32 [#allocation2], 4
      %s16 = int_to_ptr.vmem [resolvable:$true] %s15
      %21 = dma.hbm_to_vmem [thread:$0]  %s1, 8192, %s16, [#allocation3], 128, 128, 8
    $region9: #{_element_encoder_fwd.1} parent=1 // pred_fallthru
      _
    // Predicated region
    $region10: #{_element_encoder_fwd.1} parent=1 // pred_check
      _
    $region11: #{_element_encoder_fwd.1} parent=1 // pred_check_branch
      %23 = sbr.rel (0) target = $region13
    $region12: #{_element_encoder_fwd.1} parent=1 // pred_region
      %24 = dma.done [#allocation3], 8192
    $region13: #{_element_encoder_fwd.1} parent=1 // pred_fallthru
      _
    %v25 = vld [vmem:[%s0] sm:$0xff]
    %v26 = vlaneseq
    %v27 = vand.u32 %v26, 127
    %28 = vset.pattern.permute.xlu0 0
    %29 = vperm.xlu0 %28, %v25
    %v30 = vpop.permute.xlu0 %29
    %vm31 = vcmp.eq.s32.totalorder %v30, %v27
    %v32 = vsel %vm31, 1, 0
    %v33 = vcvt.s32.f32 %v32
    %34 = vset.pattern.permute.xlu0 1
    %35 = vperm.xlu0 %34, %v25
    %v36 = vpop.permute.xlu0 %35
    %vm37 = vcmp.eq.s32.totalorder %v36, %v27
    %v38 = vsel %vm37, 1, 0
    %v39 = vcvt.s32.f32 %v38
    %40 = vset.pattern.permute.xlu0 2
    %41 = vperm.xlu0 %40, %v25
    %v42 = vpop.permute.xlu0 %41
    %vm43 = vcmp.eq.s32.totalorder %v42, %v27
    %v44 = vsel %vm43, 1, 0
    %v45 = vcvt.s32.f32 %v44
    %46 = vset.pattern.permute.xlu0 3
    %47 = vperm.xlu0 %46, %v25
    %v48 = vpop.permute.xlu0 %47
    %vm49 = vcmp.eq.s32.totalorder %v48, %v27
    %v50 = vsel %vm49, 1, 0
    %v51 = vcvt.s32.f32 %v50
    %v52 = vld [vmem:[#allocation2] sm:$0xff]
    %v53 = vld [vmem:[#allocation2 + $0x8] sm:$0xff]
    %v54 = vld [vmem:[#allocation2 + $0x10] sm:$0xff]
    %v55 = vld [vmem:[#allocation2 + $0x18] sm:$0xff]
    %v56 = vld [vmem:[#allocation2 + $0x20] sm:$0xff]
    %v57 = vld [vmem:[#allocation2 + $0x28] sm:$0xff]
    %v58 = vld [vmem:[#allocation2 + $0x30] sm:$0xff]
    %v59 = vld [vmem:[#allocation2 + $0x38] sm:$0xff]
    %v60 = vld [vmem:[#allocation2 + $0x40] sm:$0xff]
    %v61 = vld [vmem:[#allocation2 + $0x48] sm:$0xff]
    %v62 = vld [vmem:[#allocation2 + $0x50] sm:$0xff]
    %v63 = vld [vmem:[#allocation2 + $0x58] sm:$0xff]
    %v64 = vld [vmem:[#allocation2 + $0x60] sm:$0xff]
    %v65 = vld [vmem:[#allocation2 + $0x68] sm:$0xff]
    %v66 = vld [vmem:[#allocation2 + $0x70] sm:$0xff]
    %v67 = vld [vmem:[#allocation2 + $0x78] sm:$0xff]
    %v68 = vld [vmem:[#allocation2 + $0x80] sm:$0xff]
    %v69 = vld [vmem:[#allocation2 + $0x88] sm:$0xff]
    %v70 = vld [vmem:[#allocation2 + $0x90] sm:$0xff]
    %v71 = vld [vmem:[#allocation2 + $0x98] sm:$0xff]
    %v72 = vld [vmem:[#allocation2 + $0xa0] sm:$0xff]
    %v73 = vld [vmem:[#allocation2 + $0xa8] sm:$0xff]
    %v74 = vld [vmem:[#allocation2 + $0xb0] sm:$0xff]
    %v75 = vld [vmem:[#allocation2 + $0xb8] sm:$0xff]
    %v76 = vld [vmem:[#allocation2 + $0xc0] sm:$0xff]
    %v77 = vld [vmem:[#allocation2 + $0xc8] sm:$0xff]
    %v78 = vld [vmem:[#allocation2 + $0xd0] sm:$0xff]
    %v79 = vld [vmem:[#allocation2 + $0xd8] sm:$0xff]
    %v80 = vld [vmem:[#allocation2 + $0xe0] sm:$0xff]
    %v81 = vld [vmem:[#allocation2 + $0xe8] sm:$0xff]
    %v82 = vld [vmem:[#allocation2 + $0xf0] sm:$0xff]
    %v83 = vld [vmem:[#allocation2 + $0xf8] sm:$0xff]
    %v84 = vld [vmem:[#allocation2 + $0x100] sm:$0xff]
    %v85 = vld [vmem:[#allocation2 + $0x108] sm:$0xff]
    %v86 = vld [vmem:[#allocation2 + $0x110] sm:$0xff]
    %v87 = vld [vmem:[#allocation2 + $0x118] sm:$0xff]
    %v88 = vld [vmem:[#allocation2 + $0x120] sm:$0xff]
    %v89 = vld [vmem:[#allocation2 + $0x128] sm:$0xff]
    %v90 = vld [vmem:[#allocation2 + $0x130] sm:$0xff]
    %v91 = vld [vmem:[#allocation2 + $0x138] sm:$0xff]
    %v92 = vld [vmem:[#allocation2 + $0x140] sm:$0xff]
    %v93 = vld [vmem:[#allocation2 + $0x148] sm:$0xff]
    %v94 = vld [vmem:[#allocation2 + $0x150] sm:$0xff]
    %v95 = vld [vmem:[#allocation2 + $0x158] sm:$0xff]
    %v96 = vld [vmem:[#allocation2 + $0x160] sm:$0xff]
    %v97 = vld [vmem:[#allocation2 + $0x168] sm:$0xff]
    %v98 = vld [vmem:[#allocation2 + $0x170] sm:$0xff]
    %v99 = vld [vmem:[#allocation2 + $0x178] sm:$0xff]
    %v100 = vld [vmem:[#allocation2 + $0x180] sm:$0xff]
    %v101 = vld [vmem:[#allocation2 + $0x188] sm:$0xff]
    %v102 = vld [vmem:[#allocation2 + $0x190] sm:$0xff]
    %v103 = vld [vmem:[#allocation2 + $0x198] sm:$0xff]
    %v104 = vld [vmem:[#allocation2 + $0x1a0] sm:$0xff]
    %v105 = vld [vmem:[#allocation2 + $0x1a8] sm:$0xff]
    %v106 = vld [vmem:[#allocation2 + $0x1b0] sm:$0xff]
    %v107 = vld [vmem:[#allocation2 + $0x1b8] sm:$0xff]
    %v108 = vld [vmem:[#allocation2 + $0x1c0] sm:$0xff]
    %v109 = vld [vmem:[#allocation2 + $0x1c8] sm:$0xff]
    %v110 = vld [vmem:[#allocation2 + $0x1d0] sm:$0xff]
    %v111 = vld [vmem:[#allocation2 + $0x1d8] sm:$0xff]
    %v112 = vld [vmem:[#allocation2 + $0x1e0] sm:$0xff]
    %v113 = vld [vmem:[#allocation2 + $0x1e8] sm:$0xff]
    %v114 = vld [vmem:[#allocation2 + $0x1f0] sm:$0xff]
    %v115 = vld [vmem:[#allocation2 + $0x1f8] sm:$0xff]
    %116 = vmatprep.subr.mxu0 0.0
    %117 = vmatpush1.msra.mxu0 %v52
    %118 = vmatprep.subr.mxu0 0.0
    %119 = vmatpush1.msra.mxu0 %v53
    %120 = vmatprep.subr.mxu0 0.0
    %121 = vmatpush1.msra.mxu0 %v54
    %122 = vmatprep.subr.mxu0 0.0
    %123 = vmatpush1.msra.mxu0 %v55
    %124 = vmatprep.subr.mxu0 0.0
    %125 = vmatpush1.msra.mxu0 %v56
    %126 = vmatprep.subr.mxu0 0.0
    %127 = vmatpush1.msra.mxu0 %v57
    %128 = vmatprep.subr.mxu0 0.0
    %129 = vmatpush1.msra.mxu0 %v58
    %130 = vmatprep.subr.mxu0 0.0
    %131 = vmatpush1.msra.mxu0 %v59
    %132 = vmatprep.subr.mxu0 0.0
    %133 = vmatpush1.msra.mxu0 %v60
    %134 = vmatprep.subr.mxu0 0.0
    %135 = vmatpush1.msra.mxu0 %v61
    %136 = vmatprep.subr.mxu0 0.0
    %137 = vmatpush1.msra.mxu0 %v62
    %138 = vmatprep.subr.mxu0 0.0
    %139 = vmatpush1.msra.mxu0 %v63
    %140 = vmatprep.subr.mxu0 0.0
    %141 = vmatpush1.msra.mxu0 %v64
    %142 = vmatprep.subr.mxu0 0.0
    %143 = vmatpush1.msra.mxu0 %v65
    %144 = vmatprep.subr.mxu0 0.0
    %145 = vmatpush1.msra.mxu0 %v66
    %146 = vmatprep.subr.mxu0 0.0
    %147 = vmatpush1.msra.mxu0 %v67
    %148 = vmatprep.subr.mxu0 0.0
    %149 = vmatpush1.msra.mxu0 %v68
    %150 = vmatprep.subr.mxu0 0.0
    %151 = vmatpush1.msra.mxu0 %v69
    %152 = vmatprep.subr.mxu0 0.0
    %153 = vmatpush1.msra.mxu0 %v70
    %154 = vmatprep.subr.mxu0 0.0
    %155 = vmatpush1.msra.mxu0 %v71
    %156 = vmatprep.subr.mxu0 0.0
    %157 = vmatpush1.msra.mxu0 %v72
    %158 = vmatprep.subr.mxu0 0.0
    %159 = vmatpush1.msra.mxu0 %v73
    %160 = vmatprep.subr.mxu0 0.0
    %161 = vmatpush1.msra.mxu0 %v74
    %162 = vmatprep.subr.mxu0 0.0
    %163 = vmatpush1.msra.mxu0 %v75
    %164 = vmatprep.subr.mxu0 0.0
    %165 = vmatpush1.msra.mxu0 %v76
    %166 = vmatprep.subr.mxu0 0.0
    %167 = vmatpush1.msra.mxu0 %v77
    %168 = vmatprep.subr.mxu0 0.0
    %169 = vmatpush1.msra.mxu0 %v78
    %170 = vmatprep.subr.mxu0 0.0
    %171 = vmatpush1.msra.mxu0 %v79
    %172 = vmatprep.subr.mxu0 0.0
    %173 = vmatpush1.msra.mxu0 %v80
    %174 = vmatprep.subr.mxu0 0.0
    %175 = vmatpush1.msra.mxu0 %v81
    %176 = vmatprep.subr.mxu0 0.0
    %177 = vmatpush1.msra.mxu0 %v82
    %178 = vmatprep.subr.mxu0 0.0
    %179 = vmatpush1.msra.mxu0 %v83
    %180 = vmatprep.mubr.f32.mxu0 %v39
    %181 = vmatmul.mubr.f32.gmra.mrb[0].mxu0 %v33
    %v182 = vpop.f32.mrb[0].mxu0
    %v183 = vadd.f32 0.0, %v182
    %v184 = vpop.f32.mrb[0].mxu0
    %185 = vdwg.mxu0
    %186 = vmatprep.subr.mxu0 0.0
    %187 = vmatpush1.msra.mxu0 %v84
    %188 = vmatprep.subr.mxu0 0.0
    %189 = vmatpush1.msra.mxu0 %v85
    %190 = vmatprep.subr.mxu0 0.0
    %191 = vmatpush1.msra.mxu0 %v86
    %192 = vmatprep.subr.mxu0 0.0
    %193 = vmatpush1.msra.mxu0 %v87
    %194 = vmatprep.subr.mxu0 0.0
    %195 = vmatpush1.msra.mxu0 %v88
    %196 = vmatprep.subr.mxu0 0.0
    %197 = vmatpush1.msra.mxu0 %v89
    %198 = vmatprep.subr.mxu0 0.0
    %199 = vmatpush1.msra.mxu0 %v90
    %200 = vmatprep.subr.mxu0 0.0
    %201 = vmatpush1.msra.mxu0 %v91
    %202 = vmatprep.subr.mxu0 0.0
    %203 = vmatpush1.msra.mxu0 %v92
    %204 = vmatprep.subr.mxu0 0.0
    %205 = vmatpush1.msra.mxu0 %v93
    %206 = vmatprep.subr.mxu0 0.0
    %207 = vmatpush1.msra.mxu0 %v94
    %208 = vmatprep.subr.mxu0 0.0
    %209 = vmatpush1.msra.mxu0 %v95
    %210 = vmatprep.subr.mxu0 0.0
    %211 = vmatpush1.msra.mxu0 %v96
    %212 = vmatprep.subr.mxu0 0.0
    %213 = vmatpush1.msra.mxu0 %v97
    %214 = vmatprep.subr.mxu0 0.0
    %215 = vmatpush1.msra.mxu0 %v98
    %216 = vmatprep.subr.mxu0 0.0
    %217 = vmatpush1.msra.mxu0 %v99
    %218 = vmatprep.subr.mxu0 0.0
    %219 = vmatpush1.msra.mxu0 %v100
    %220 = vmatprep.subr.mxu0 0.0
    %221 = vmatpush1.msra.mxu0 %v101
    %222 = vmatprep.subr.mxu0 0.0
    %223 = vmatpush1.msra.mxu0 %v102
    %224 = vmatprep.subr.mxu0 0.0
    %225 = vmatpush1.msra.mxu0 %v103
    %226 = vmatprep.subr.mxu0 0.0
    %227 = vmatpush1.msra.mxu0 %v104
    %228 = vmatprep.subr.mxu0 0.0
    %229 = vmatpush1.msra.mxu0 %v105
    %230 = vmatprep.subr.mxu0 0.0
    %231 = vmatpush1.msra.mxu0 %v106
    %232 = vmatprep.subr.mxu0 0.0
    %233 = vmatpush1.msra.mxu0 %v107
    %234 = vmatprep.subr.mxu0 0.0
    %235 = vmatpush1.msra.mxu0 %v108
    %236 = vmatprep.subr.mxu0 0.0
    %237 = vmatpush1.msra.mxu0 %v109
    %238 = vmatprep.subr.mxu0 0.0
    %239 = vmatpush1.msra.mxu0 %v110
    %240 = vmatprep.subr.mxu0 0.0
    %241 = vmatpush1.msra.mxu0 %v111
    %242 = vmatprep.subr.mxu0 0.0
    %243 = vmatpush1.msra.mxu0 %v112
    %244 = vmatprep.subr.mxu0 0.0
    %245 = vmatpush1.msra.mxu0 %v113
    %246 = vmatprep.subr.mxu0 0.0
    %247 = vmatpush1.msra.mxu0 %v114
    %248 = vmatprep.subr.mxu0 0.0
    %249 = vmatpush1.msra.mxu0 %v115
    %250 = vmatprep.mubr.f32.mxu0 %v51
    %251 = vmatmul.mubr.f32.gmra.mrb[0].mxu0 %v45
    %v252 = vpop.f32.mrb[0].mxu0
    %v253 = vadd.f32 %v183, %v252
    %v254 = vpop.f32.mrb[0].mxu0
    %255 = vdwg.mxu0
    %256 = vst [vmem:[%s2] sm:$0xff] %v253
    // Predicated region
    $region14: #{_element_encoder_fwd.1} parent=1 // pred_check
      _
    $region15: #{_element_encoder_fwd.1} parent=1 // pred_check_branch
      %258 = sbr.rel (0) target = $region17
    $region16: #{_element_encoder_fwd.1} parent=1 // pred_region
      _
    $region17: #{_element_encoder_fwd.1} parent=1 // pred_fallthru
      _
    // Predicated region
    $region18: #{_element_encoder_fwd.1} parent=1 // pred_check
      _
    $region19: #{_element_encoder_fwd.1} parent=1 // pred_check_branch
      %260 = sbr.rel (0) target = $region21
    $region20: #{_element_encoder_fwd.1} parent=1 // pred_region
      _
    $region21: #{_element_encoder_fwd.1} parent=1 // pred_fallthru
      _
    %261 = vsyncpa [#allocation3], 1

</llo_original>
